<compile_context>
chip_gen: v7x
topology: tpu7x:2x2x1
jax: 0.10.0
libtpu: 0.0.40
codegen_flags: <defaults>
</compile_context>

<pallas_src>
import jax
import jax.numpy as jnp
from jax.experimental import pallas as pl
from jax.experimental.pallas import tpu as pltpu


# --------------------------------------------------------------------------- #
# Kernel
# --------------------------------------------------------------------------- #
def _res_basic_block_kernel(x_ref, w1_ref, b1_ref, w2_ref, b2_ref,
                            wse1_ref, wse2_ref, o_ref):
    # x_ref:    (TB, C, L)  activation slab, native (bf16) dtype
    # w1_ref:   (C, C)      conv1 weight, BN1 folded, compute dtype (single copy)
    # b1_ref:   (C, 1)      conv1 bias,  BN1 folded, f32
    # w2_ref:   (C, C)      conv2 weight, BN2 folded, compute dtype
    # b2_ref:   (C, 1)      conv2 bias,  BN2 folded, f32
    # wse1_ref: (Hp, C)     SE fc1 weight, zero-padded to Hp >= 8
    # wse2_ref: (C, Hp)     SE fc2 weight, zero-padded to Hp >= 8
    # o_ref:    (TB, C, L)  output slab (lane-dense: L is a multiple of 128)
    w1 = w1_ref[...]
    w2 = w2_ref[...]
    wse1 = wse1_ref[...]
    wse2 = wse2_ref[...]
    b1 = b1_ref[...]
    b2 = b2_ref[...]
    tb = x_ref.shape[0]

    # Unrolled loop over the batch rows of the slab: each row is a clean
    # (C, C) @ (C, L) 2-D MXU matmul reusing the single in-VMEM weight copy.
    # The kernel is HBM-bandwidth-bound, so this compute (and the tiny SE
    # matmuls) is hidden under the slab DMA regardless of MXU fill.
    for b in range(tb):
        xb = x_ref[b]                                              # (C, L)
        xc = xb.astype(w1.dtype)

        # conv1 (1x1) + folded BN1 + ReLU.
        h = jnp.dot(w1, xc, preferred_element_type=jnp.float32) + b1
        h = jnp.maximum(h, 0.0)

        # conv2 (1x1) + folded BN2.
        h = jnp.dot(w2, h.astype(w2.dtype),
                    preferred_element_type=jnp.float32) + b2       # (C, L) f32

        # Squeeze-and-excitation gate (ResLayer): pool over L, two small FCs.
        pooled = jnp.mean(h, axis=-1, keepdims=True)               # (C, 1) f32
        g = jnp.maximum(
            jnp.dot(wse1, pooled.astype(wse1.dtype),
                    preferred_element_type=jnp.float32), 0.0)      # (Hp, 1)
        y = jax.nn.sigmoid(
            jnp.dot(wse2, g.astype(wse2.dtype),
                    preferred_element_type=jnp.float32))           # (C, 1)

        # Gate, residual add (promote x inline, no persistent f32 copy), ReLU.
        out = jnp.maximum(h * y + xb.astype(jnp.float32), 0.0)
        o_ref[b] = out.astype(o_ref.dtype)


# --------------------------------------------------------------------------- #
# Wrapper helpers
# --------------------------------------------------------------------------- #
def _fold_bn_into_pointwise_conv(w, b, gamma, beta, mean, var, eps):
    """Fold eval-mode BatchNorm1d into a 1x1 Conv1d (weight (out, in, 1)); f32."""
    w = w[:, :, 0].astype(jnp.float32)
    b = b.astype(jnp.float32)
    gamma = gamma.astype(jnp.float32)
    beta = beta.astype(jnp.float32)
    mean = mean.astype(jnp.float32)
    var = var.astype(jnp.float32)
    scale = gamma * jax.lax.rsqrt(var + eps)              # (out,)
    w_f = w * scale[:, None]                              # (out, in)
    b_f = b * scale + (beta - mean * scale)               # (out,)
    return w_f, b_f


def _pick_tb(B, C, L, itemsize, target_bytes):
    """Batch rows per grid step: target-sized slabs, but keep >= 4 grid steps
    when B allows (>= 2 steps per TensorCore on dual-TC v7x parts)."""
    tb = max(1, min(B, target_bytes // max(1, C * L * itemsize)))
    if B >= 4:
        tb = min(tb, B // 4)
    elif B >= 2:
        tb = min(tb, B // 2)
    tb = max(tb, 1)
    while B % tb:                       # make TB an exact divisor of B
        tb -= 1
    return tb


# --------------------------------------------------------------------------- #
# Wrapper
# --------------------------------------------------------------------------- #
def res_basic_block(x, params, *, eps=1e-5, target_block_bytes=2 << 20):
    """x: (B, C, L); eval-mode ResBasicBlock with inplanes == planes == C.

    target_block_bytes: per-slab budget.  The 2 MiB default is sized for v7x's
    64 MiB VMEM; on 128 MiB parts (v5e/v6e) 4-8 MiB amortizes per-step overhead
    better when B is large enough.
    """
    B, C, L = x.shape
    H = params["w_se1"].shape[0]
    assert params["w_conv1"].shape == (C, C, 1)
    assert params["w_conv2"].shape == (C, C, 1)
    assert params["w_se1"].shape == (H, C) and params["w_se2"].shape == (C, H)

    # bf16 I/O when the activations are bf16; fold BN in f32 then cast.
    compute_dtype = jnp.bfloat16 if x.dtype == jnp.bfloat16 else jnp.float32

    w1_f, b1_f = _fold_bn_into_pointwise_conv(
        params["w_conv1"], params["b_conv1"], params["bn1_gamma"],
        params["bn1_beta"], params["bn1_mean"], params["bn1_var"], eps)
    w2_f, b2_f = _fold_bn_into_pointwise_conv(
        params["w_conv2"], params["b_conv2"], params["bn2_gamma"],
        params["bn2_beta"], params["bn2_mean"], params["bn2_var"], eps)

    w1_k = w1_f.astype(compute_dtype)                      # (C, C) single copy
    w2_k = w2_f.astype(compute_dtype)
    b1_k = b1_f[:, None]                                   # (C, 1) f32
    b2_k = b2_f[:, None]

    # Zero-pad the SE hidden dim to >= 8 (exact: padded rows/cols are zero).
    Hp = max(8, -(-H // 8) * 8)
    wse1_p = jnp.zeros((Hp, C), compute_dtype).at[:H, :].set(
        params["w_se1"].astype(compute_dtype))
    wse2_p = jnp.zeros((C, Hp), compute_dtype).at[:, :H].set(
        params["w_se2"].astype(compute_dtype))

    itemsize = x.dtype.itemsize
    TB = _pick_tb(B, C, L, itemsize, target_block_bytes)
    grid = (B // TB,)

    kernel_inputs = (x, w1_k, b1_k, w2_k, b2_k, wse1_p, wse2_p)

    # VMEM budget from actual residency: double-buffered x/out slabs, the
    # (revisited) weight blocks, plus headroom for per-row f32 temporaries.
    block_bytes = TB * C * L * itemsize
    param_bytes = sum(int(a.size) * a.dtype.itemsize for a in kernel_inputs[1:])
    resident = 4 * block_bytes + 2 * param_bytes + 8 * C * L * 4
    cap = (32 << 20) if target_block_bytes <= (2 << 20) else (96 << 20)
    vmem_limit = int(min(max(16 << 20, 2 * resident), cap))

    cost = pl.CostEstimate(
        flops=int(4 * B * C * C * L + 4 * B * C * Hp + 8 * B * C * L),
        transcendentals=int(B * C),
        bytes_accessed=int(2 * B * C * L * itemsize + param_bytes),
    )

    return pl.pallas_call(
        _res_basic_block_kernel,
        out_shape=jax.ShapeDtypeStruct((B, C, L), x.dtype),
        grid_spec=pltpu.PrefetchScalarGridSpec(
            num_scalar_prefetch=0,
            grid=grid,
            in_specs=[
                pl.BlockSpec((TB, C, L), lambda b: (b, 0, 0)),   # x slab
                pl.BlockSpec((C, C), lambda b: (0, 0)),          # conv1 (folded)
                pl.BlockSpec((C, 1), lambda b: (0, 0)),          # bias1 (folded)
                pl.BlockSpec((C, C), lambda b: (0, 0)),          # conv2 (folded)
                pl.BlockSpec((C, 1), lambda b: (0, 0)),          # bias2 (folded)
                pl.BlockSpec((Hp, C), lambda b: (0, 0)),         # SE fc1 (padded)
                pl.BlockSpec((C, Hp), lambda b: (0, 0)),         # SE fc2 (padded)
            ],
            out_specs=pl.BlockSpec((TB, C, L), lambda b: (b, 0, 0)),
        ),
        compiler_params=pltpu.CompilerParams(
            dimension_semantics=("parallel",),
            vmem_limit_bytes=vmem_limit,
        ),
        cost_estimate=cost,
    )(*kernel_inputs)


# --------------------------------------------------------------------------- #
# Pure-JAX reference (unfolded BN, f32) for correctness checking
# --------------------------------------------------------------------------- #
def res_basic_block_ref(x, p, eps=1e-5):
    xf = x.astype(jnp.float32)

    def bn(h, g, b, m, v):
        return (h - m[:, None]) / jnp.sqrt(v[:, None] + eps) * g[:, None] + b[:, None]

    h = jnp.einsum("pc,bcl->bpl", p["w_conv1"][:, :, 0], xf) + p["b_conv1"][:, None]
    h = jnp.maximum(bn(h, p["bn1_gamma"], p["bn1_beta"], p["bn1_mean"], p["bn1_var"]), 0.0)
    h = jnp.einsum("pc,bcl->bpl", p["w_conv2"][:, :, 0], h) + p["b_conv2"][:, None]
    h = bn(h, p["bn2_gamma"], p["bn2_beta"], p["bn2_mean"], p["bn2_var"])
    pooled = jnp.mean(h, axis=-1)
    g = jnp.maximum(pooled @ p["w_se1"].T, 0.0)
    y = jax.nn.sigmoid(g @ p["w_se2"].T)
    return jnp.maximum(h * y[:, :, None] + xf, 0.0)


# --------------------------------------------------------------------------- #
# Demo / self-test
# --------------------------------------------------------------------------- #
if __name__ == "__main__":
    # inplanes == planes == C (residual add with downsample=None), C divisible
    # by reduction=16, lane-dense L=128, bf16 activations.
    B, C, L = 8, 32, 128
    reduction = 16
    H = C // reduction

    key = jax.random.PRNGKey(0)
    ks = jax.random.split(key, 16)
    f32 = jnp.float32

    x = jax.random.normal(ks[0], (B, C, L), dtype=f32).astype(jnp.bfloat16)
    params = dict(
        w_conv1=jax.random.normal(ks[1], (C, C, 1), f32) * (1.0 / jnp.sqrt(C)),
        b_conv1=jax.random.normal(ks[2], (C,), f32) * 0.1,
        bn1_gamma=1.0 + 0.1 * jax.random.normal(ks[3], (C,), f32),
        bn1_beta=0.1 * jax.random.normal(ks[4], (C,), f32),
        bn1_mean=0.1 * jax.random.normal(ks[5], (C,), f32),
        bn1_var=1.0 + 0.1 * jnp.abs(jax.random.normal(ks[6], (C,), f32)),
        w_conv2=jax.random.normal(ks[7], (C, C, 1), f32) * (1.0 / jnp.sqrt(C)),
        b_conv2=jax.random.normal(ks[8], (C,), f32) * 0.1,
        bn2_gamma=1.0 + 0.1 * jax.random.normal(ks[9], (C,), f32),
        bn2_beta=0.1 * jax.random.normal(ks[10], (C,), f32),
        bn2_mean=0.1 * jax.random.normal(ks[11], (C,), f32),
        bn2_var=1.0 + 0.1 * jnp.abs(jax.random.normal(ks[12], (C,), f32)),
        w_se1=jax.random.normal(ks[13], (H, C), f32) * (1.0 / jnp.sqrt(C)),
        w_se2=jax.random.normal(ks[14], (C, H), f32) * (1.0 / jnp.sqrt(H)),
    )

    out = res_basic_block(x, params)
    out = jax.block_until_ready(out)
    assert out.shape == (B, C, L) and out.dtype == x.dtype

    ref = res_basic_block_ref(x, params)                   # f32 reference
    err = float(jnp.max(jnp.abs(out.astype(f32) - ref)))
    # bf16 I/O + bf16 folded weights vs. an f32 unfolded-BN reference.
    assert jnp.allclose(out.astype(f32), ref, atol=1e-1, rtol=5e-2), (
        f"mismatch vs reference, max abs err={err}")

    print("KERNEL_OK")
</pallas_src>

<mosaic_0001>
module attributes {stable_mosaic.version = 11 : i64} {
  func.func @_res_basic_block_kernel(%arg0: i32, %arg1: memref<2x32x128xbf16, #tpu.memory_space<vmem>>, %arg2: memref<32x32xbf16, #tpu.memory_space<vmem>>, %arg3: memref<32x1xf32, #tpu.memory_space<vmem>>, %arg4: memref<32x32xbf16, #tpu.memory_space<vmem>>, %arg5: memref<32x1xf32, #tpu.memory_space<vmem>>, %arg6: memref<8x32xbf16, #tpu.memory_space<vmem>>, %arg7: memref<32x8xbf16, #tpu.memory_space<vmem>>, %arg8: memref<2x32x128xbf16, #tpu.memory_space<vmem>>) attributes {dimension_semantics = [#tpu.dimension_semantics<parallel>], iteration_bounds = array<i64: 4>, scalar_prefetch = 0 : i64, scratch_operands = 0 : i64, tpu.core_type = #tpu.core_type<tc>, window_params = [{transform_indices = @transform_0, window_bounds = array<i64: 2, 32, 128>}, {pipeline_mode = #tpu.pipeline_mode<synchronous>, transform_indices = @transform_1, window_bounds = array<i64: 32, 32>}, {pipeline_mode = #tpu.pipeline_mode<synchronous>, transform_indices = @transform_2, window_bounds = array<i64: 32, 1>}, {pipeline_mode = #tpu.pipeline_mode<synchronous>, transform_indices = @transform_3, window_bounds = array<i64: 32, 32>}, {pipeline_mode = #tpu.pipeline_mode<synchronous>, transform_indices = @transform_4, window_bounds = array<i64: 32, 1>}, {pipeline_mode = #tpu.pipeline_mode<synchronous>, transform_indices = @transform_5, window_bounds = array<i64: 8, 32>}, {pipeline_mode = #tpu.pipeline_mode<synchronous>, transform_indices = @transform_6, window_bounds = array<i64: 32, 8>}, {transform_indices = @transform_7, window_bounds = array<i64: 2, 32, 128>}]} {
    %c0 = arith.constant 0 : index
    %c0_0 = arith.constant 0 : index
    %0 = vector.load %arg2[%c0, %c0_0] : memref<32x32xbf16, #tpu.memory_space<vmem>>, vector<32x32xbf16>
    %c0_1 = arith.constant 0 : index
    %c0_2 = arith.constant 0 : index
    %1 = vector.load %arg4[%c0_1, %c0_2] : memref<32x32xbf16, #tpu.memory_space<vmem>>, vector<32x32xbf16>
    %c0_3 = arith.constant 0 : index
    %c0_4 = arith.constant 0 : index
    %2 = vector.load %arg6[%c0_3, %c0_4] : memref<8x32xbf16, #tpu.memory_space<vmem>>, vector<8x32xbf16>
    %c0_5 = arith.constant 0 : index
    %c0_6 = arith.constant 0 : index
    %3 = vector.load %arg7[%c0_5, %c0_6] : memref<32x8xbf16, #tpu.memory_space<vmem>>, vector<32x8xbf16>
    %c0_7 = arith.constant 0 : index
    %c0_8 = arith.constant 0 : index
    %4 = vector.load %arg3[%c0_7, %c0_8] : memref<32x1xf32, #tpu.memory_space<vmem>>, vector<32x1xf32>
    %c0_9 = arith.constant 0 : index
    %c0_10 = arith.constant 0 : index
    %5 = vector.load %arg5[%c0_9, %c0_10] : memref<32x1xf32, #tpu.memory_space<vmem>>, vector<32x1xf32>
    %c0_11 = arith.constant 0 : index
    %c0_12 = arith.constant 0 : index
    %c0_13 = arith.constant 0 : index
    %6 = vector.load %arg1[%c0_11, %c0_12, %c0_13] : memref<2x32x128xbf16, #tpu.memory_space<vmem>>, vector<1x32x128xbf16>
    %7 = vector.shape_cast %6 : vector<1x32x128xbf16> to vector<32x128xbf16>
    %cst = arith.constant dense<0.000000e+00> : vector<32x128xf32>
    %8 = tpu.matmul %0, %7, %cst {dimension_numbers = #tpu.dot_dimension_numbers<[1], [0], [0], [1], [0, 0, 1, 1], [], []>} : vector<32x32xbf16>, vector<32x128xbf16>, vector<32x128xf32> -> vector<32x128xf32>
    %9 = vector.broadcast %4 : vector<32x1xf32> to vector<32x128xf32>
    %10 = arith.addf %8, %9 : vector<32x128xf32>
    %cst_14 = arith.constant 0.000000e+00 : f32
    %11 = vector.broadcast %cst_14 : f32 to vector<32x128xf32>
    %12 = arith.maximumf %10, %11 : vector<32x128xf32>
    %13 = arith.truncf %12 : vector<32x128xf32> to vector<32x128xbf16>
    %cst_15 = arith.constant dense<0.000000e+00> : vector<32x128xf32>
    %14 = tpu.matmul %1, %13, %cst_15 {dimension_numbers = #tpu.dot_dimension_numbers<[1], [0], [0], [1], [0, 0, 1, 1], [], []>} : vector<32x32xbf16>, vector<32x128xbf16>, vector<32x128xf32> -> vector<32x128xf32>
    %15 = vector.broadcast %5 : vector<32x1xf32> to vector<32x128xf32>
    %16 = arith.addf %14, %15 : vector<32x128xf32>
    %cst_16 = arith.constant dense<0.000000e+00> : vector<32xf32>
    %17 = vector.multi_reduction <add>, %16, %cst_16 [1] : vector<32x128xf32> to vector<32xf32>
    %18 = vector.shape_cast %17 : vector<32xf32> to vector<32x1xf32>
    %cst_17 = arith.constant 1.280000e+02 : f32
    %19 = vector.broadcast %cst_17 : f32 to vector<32x1xf32>
    %20 = arith.divf %18, %19 : vector<32x1xf32>
    %21 = arith.truncf %20 : vector<32x1xf32> to vector<32x1xbf16>
    %cst_18 = arith.constant dense<0.000000e+00> : vector<8x1xf32>
    %22 = tpu.matmul %2, %21, %cst_18 {dimension_numbers = #tpu.dot_dimension_numbers<[1], [0], [0], [1], [0, 0, 1, 1], [], []>} : vector<8x32xbf16>, vector<32x1xbf16>, vector<8x1xf32> -> vector<8x1xf32>
    %cst_19 = arith.constant 0.000000e+00 : f32
    %23 = vector.broadcast %cst_19 : f32 to vector<8x1xf32>
    %24 = arith.maximumf %22, %23 : vector<8x1xf32>
    %25 = arith.truncf %24 : vector<8x1xf32> to vector<8x1xbf16>
    %cst_20 = arith.constant dense<0.000000e+00> : vector<32x1xf32>
    %26 = tpu.matmul %3, %25, %cst_20 {dimension_numbers = #tpu.dot_dimension_numbers<[1], [0], [0], [1], [0, 0, 1, 1], [], []>} : vector<32x8xbf16>, vector<8x1xbf16>, vector<32x1xf32> -> vector<32x1xf32>
    %27 = arith.negf %26 : vector<32x1xf32>
    %28 = math.exp %27 : vector<32x1xf32>
    %cst_21 = arith.constant 1.000000e+00 : f32
    %29 = vector.broadcast %cst_21 : f32 to vector<32x1xf32>
    %30 = arith.addf %29, %28 : vector<32x1xf32>
    %31 = arith.divf %29, %30 : vector<32x1xf32>
    %32 = vector.broadcast %31 : vector<32x1xf32> to vector<32x128xf32>
    %33 = arith.mulf %16, %32 : vector<32x128xf32>
    %34 = arith.extf %7 : vector<32x128xbf16> to vector<32x128xf32>
    %35 = arith.addf %33, %34 : vector<32x128xf32>
    %cst_22 = arith.constant 0.000000e+00 : f32
    %36 = vector.broadcast %cst_22 : f32 to vector<32x128xf32>
    %37 = arith.maximumf %35, %36 : vector<32x128xf32>
    %38 = arith.truncf %37 : vector<32x128xf32> to vector<32x128xbf16>
    %c0_23 = arith.constant 0 : index
    %c0_24 = arith.constant 0 : index
    %c0_25 = arith.constant 0 : index
    %39 = vector.load %arg8[%c0_23, %c0_24, %c0_25] : memref<2x32x128xbf16, #tpu.memory_space<vmem>>, vector<1x32x128xbf16>
    %40 = vector.shape_cast %39 : vector<1x32x128xbf16> to vector<32x128xbf16>
    %41 = vector.shape_cast %38 : vector<32x128xbf16> to vector<1x32x128xbf16>
    tpu.vector_store %arg8[%c0_23, %c0_24, %c0_25], %41 {strides = array<i32>} : memref<2x32x128xbf16, #tpu.memory_space<vmem>>, vector<1x32x128xbf16>,
    %c1 = arith.constant 1 : index
    %c0_26 = arith.constant 0 : index
    %c0_27 = arith.constant 0 : index
    %42 = vector.load %arg1[%c1, %c0_26, %c0_27] : memref<2x32x128xbf16, #tpu.memory_space<vmem>>, vector<1x32x128xbf16>
    %43 = vector.shape_cast %42 : vector<1x32x128xbf16> to vector<32x128xbf16>
    %cst_28 = arith.constant dense<0.000000e+00> : vector<32x128xf32>
    %44 = tpu.matmul %0, %43, %cst_28 {dimension_numbers = #tpu.dot_dimension_numbers<[1], [0], [0], [1], [0, 0, 1, 1], [], []>} : vector<32x32xbf16>, vector<32x128xbf16>, vector<32x128xf32> -> vector<32x128xf32>
    %45 = vector.broadcast %4 : vector<32x1xf32> to vector<32x128xf32>
    %46 = arith.addf %44, %45 : vector<32x128xf32>
    %cst_29 = arith.constant 0.000000e+00 : f32
    %47 = vector.broadcast %cst_29 : f32 to vector<32x128xf32>
    %48 = arith.maximumf %46, %47 : vector<32x128xf32>
    %49 = arith.truncf %48 : vector<32x128xf32> to vector<32x128xbf16>
    %cst_30 = arith.constant dense<0.000000e+00> : vector<32x128xf32>
    %50 = tpu.matmul %1, %49, %cst_30 {dimension_numbers = #tpu.dot_dimension_numbers<[1], [0], [0], [1], [0, 0, 1, 1], [], []>} : vector<32x32xbf16>, vector<32x128xbf16>, vector<32x128xf32> -> vector<32x128xf32>
    %51 = vector.broadcast %5 : vector<32x1xf32> to vector<32x128xf32>
    %52 = arith.addf %50, %51 : vector<32x128xf32>
    %cst_31 = arith.constant dense<0.000000e+00> : vector<32xf32>
    %53 = vector.multi_reduction <add>, %52, %cst_31 [1] : vector<32x128xf32> to vector<32xf32>
    %54 = vector.shape_cast %53 : vector<32xf32> to vector<32x1xf32>
    %cst_32 = arith.constant 1.280000e+02 : f32
    %55 = vector.broadcast %cst_32 : f32 to vector<32x1xf32>
    %56 = arith.divf %54, %55 : vector<32x1xf32>
    %57 = arith.truncf %56 : vector<32x1xf32> to vector<32x1xbf16>
    %cst_33 = arith.constant dense<0.000000e+00> : vector<8x1xf32>
    %58 = tpu.matmul %2, %57, %cst_33 {dimension_numbers = #tpu.dot_dimension_numbers<[1], [0], [0], [1], [0, 0, 1, 1], [], []>} : vector<8x32xbf16>, vector<32x1xbf16>, vector<8x1xf32> -> vector<8x1xf32>
    %cst_34 = arith.constant 0.000000e+00 : f32
    %59 = vector.broadcast %cst_34 : f32 to vector<8x1xf32>
    %60 = arith.maximumf %58, %59 : vector<8x1xf32>
    %61 = arith.truncf %60 : vector<8x1xf32> to vector<8x1xbf16>
    %cst_35 = arith.constant dense<0.000000e+00> : vector<32x1xf32>
    %62 = tpu.matmul %3, %61, %cst_35 {dimension_numbers = #tpu.dot_dimension_numbers<[1], [0], [0], [1], [0, 0, 1, 1], [], []>} : vector<32x8xbf16>, vector<8x1xbf16>, vector<32x1xf32> -> vector<32x1xf32>
    %63 = arith.negf %62 : vector<32x1xf32>
    %64 = math.exp %63 : vector<32x1xf32>
    %cst_36 = arith.constant 1.000000e+00 : f32
    %65 = vector.broadcast %cst_36 : f32 to vector<32x1xf32>
    %66 = arith.addf %65, %64 : vector<32x1xf32>
    %67 = arith.divf %65, %66 : vector<32x1xf32>
    %68 = vector.broadcast %67 : vector<32x1xf32> to vector<32x128xf32>
    %69 = arith.mulf %52, %68 : vector<32x128xf32>
    %70 = arith.extf %43 : vector<32x128xbf16> to vector<32x128xf32>
    %71 = arith.addf %69, %70 : vector<32x128xf32>
    %cst_37 = arith.constant 0.000000e+00 : f32
    %72 = vector.broadcast %cst_37 : f32 to vector<32x128xf32>
    %73 = arith.maximumf %71, %72 : vector<32x128xf32>
    %74 = arith.truncf %73 : vector<32x128xf32> to vector<32x128xbf16>
    %c1_38 = arith.constant 1 : index
    %c0_39 = arith.constant 0 : index
    %c0_40 = arith.constant 0 : index
    %75 = vector.load %arg8[%c1_38, %c0_39, %c0_40] : memref<2x32x128xbf16, #tpu.memory_space<vmem>>, vector<1x32x128xbf16>
    %76 = vector.shape_cast %75 : vector<1x32x128xbf16> to vector<32x128xbf16>
    %77 = vector.shape_cast %74 : vector<32x128xbf16> to vector<1x32x128xbf16>
    tpu.vector_store %arg8[%c1_38, %c0_39, %c0_40], %77 {strides = array<i32>} : memref<2x32x128xbf16, #tpu.memory_space<vmem>>, vector<1x32x128xbf16>,
    return
  }
  func.func @transform_0(%arg0: i32) -> (i32, i32, i32) {
    %c0_i32 = arith.constant 0 : i32
    %c0_i32_0 = arith.constant 0 : i32
    %c0_i32_1 = arith.constant 0 : i32
    return %arg0, %c0_i32, %c0_i32_0 : i32, i32, i32
  }
  func.func @transform_1(%arg0: i32) -> (i32, i32) {
    %c0_i32 = arith.constant 0 : i32
    %c0_i32_0 = arith.constant 0 : i32
    %c0_i32_1 = arith.constant 0 : i32
    return %c0_i32, %c0_i32_0 : i32, i32
  }
  func.func @transform_2(%arg0: i32) -> (i32, i32) {
    %c0_i32 = arith.constant 0 : i32
    %c0_i32_0 = arith.constant 0 : i32
    %c0_i32_1 = arith.constant 0 : i32
    return %c0_i32, %c0_i32_0 : i32, i32
  }
  func.func @transform_3(%arg0: i32) -> (i32, i32) {
    %c0_i32 = arith.constant 0 : i32
    %c0_i32_0 = arith.constant 0 : i32
    %c0_i32_1 = arith.constant 0 : i32
    return %c0_i32, %c0_i32_0 : i32, i32
  }
  func.func @transform_4(%arg0: i32) -> (i32, i32) {
    %c0_i32 = arith.constant 0 : i32
    %c0_i32_0 = arith.constant 0 : i32
    %c0_i32_1 = arith.constant 0 : i32
    return %c0_i32, %c0_i32_0 : i32, i32
  }
  func.func @transform_5(%arg0: i32) -> (i32, i32) {
    %c0_i32 = arith.constant 0 : i32
    %c0_i32_0 = arith.constant 0 : i32
    %c0_i32_1 = arith.constant 0 : i32
    return %c0_i32, %c0_i32_0 : i32, i32
  }
  func.func @transform_6(%arg0: i32) -> (i32, i32) {
    %c0_i32 = arith.constant 0 : i32
    %c0_i32_0 = arith.constant 0 : i32
    %c0_i32_1 = arith.constant 0 : i32
    return %c0_i32, %c0_i32_0 : i32, i32
  }
  func.func @transform_7(%arg0: i32) -> (i32, i32, i32) {
    %c0_i32 = arith.constant 0 : i32
    %c0_i32_0 = arith.constant 0 : i32
    %c0_i32_1 = arith.constant 0 : i32
    return %arg0, %c0_i32, %c0_i32_0 : i32, i32, i32
  }
}

</mosaic_0001>

<llo_original>
// kernel: tpu_custom_call.1
$region0: #{tpu_custom_call.1}
  #allocation0 [shape = 'u32[]', space=smem, size = 0x4, offset = 0x4, fixed_abs, tag = 'smem constant byte address 0x4 - core index']
  #allocation1 [shape = 'u32[144,128]{1,0:T(1,128)}', space=vmem, size = 0x12000, scoped, tag = 'internal scratch']
  %s0 = inlined_call_operand.hbm [shape: bf16[8,32,128], index: 0, kind: input, shape index: {}]
  %s1 = inlined_call_operand.vmem [shape: bf16[32,32], index: 1, kind: input, shape index: {}]
  %s2 = inlined_call_operand.vmem [shape: f32[32,1], index: 2, kind: input, shape index: {}]
  %s3 = inlined_call_operand.vmem [shape: bf16[32,32], index: 3, kind: input, shape index: {}]
  %s4 = inlined_call_operand.vmem [shape: f32[32,1], index: 4, kind: input, shape index: {}]
  %s5 = inlined_call_operand.vmem [shape: bf16[8,32], index: 5, kind: input, shape index: {}]
  %s6 = inlined_call_operand.vmem [shape: bf16[32,8], index: 6, kind: input, shape index: {}]
  %s7 = inlined_call_operand.hbm [shape: bf16[8,32,128], index: 7, kind: output, shape index: {}]
  %s8 = sld [smem:[#allocation0]]
  $region65: #{tpu_custom_call.1} parent=0
    _
  %s10 = ssub.s32 1, %s8
  %s11 = scalar_select 0, %s10, %s8
  $region1: #{tpu_custom_call.1} parent=0
    #allocation2 [shape = 'u8[32768]{0}', space=vmem, size = 0x8000, scoped, tag = 'input window, operand 0']
    #allocation3 [shape = 's32[2]{0}', space=sflag, size = 0x8, scoped, tag = 'scoped memory for tpu_custom_call.1']
    #allocation4 [shape = 's32[2]{0}', space=sflag, size = 0x8, scoped, tag = 'scoped memory for tpu_custom_call.1']
    #allocation5 [shape = 'u8[32768]{0}', space=vmem, size = 0x8000, scoped, tag = 'output window, operand 0']
    %12 = vsyncpa [#allocation3], 0
    %s13 = scalar_lea.sflag [#allocation3], 1
    %14 = vsyncpa %s13, 0
    %15 = vsyncpa [#allocation4], 0
    %s16 = scalar_lea.sflag [#allocation4], 1
    %17 = vsyncpa %s16, 0
    loop: start=0, step=1, limit=6
    $region2: #{tpu_custom_call.1} parent=1 // loop_pre_header
      _
    $region3: #{tpu_custom_call.1} parent=1 // loop_header
      %s19 = sphi 0, %s23
      %p20 = scmp.ge.s32.totalorder %s19, 6
      %s29 = sphi 0, %s31
      %s32 = sphi 0, %s29
      %s33 = sphi 0, %s32
      %s49 = sphi 0, %s33
      %s53 = sphi 0, %s53
      %s55 = sphi 0, %s53
      %s56 = sphi 0, %s55
      %s70 = sphi 0, %s56
      %s74 = sphi 0, %s74
      %s76 = sphi 0, %s74
      %s77 = sphi 0, %s76
      %s91 = sphi 0, %s77
      %s95 = sphi 0, %s95
      %s97 = sphi 0, %s95
      %s98 = sphi 0, %s97
      %s112 = sphi 0, %s98
      %s116 = sphi 0, %s116
      %s118 = sphi 0, %s116
      %s119 = sphi 0, %s118
      %s133 = sphi 0, %s119
      %s137 = sphi 0, %s137
      %s139 = sphi 0, %s137
      %s140 = sphi 0, %s139
      %s154 = sphi 0, %s140
      %s158 = sphi 0, %s158
      %s160 = sphi 0, %s158
      %s161 = sphi 0, %s160
      %s175 = sphi 0, %s161
      %s181 = sphi 0, %s183
      %s184 = sphi 0, %s181
      %s185 = sphi 0, %s184
      %s201 = sphi 0, %s185
    $region4: #{tpu_custom_call.1} parent=1 // loop_header_branch
      %22 = sbr.rel (%p20) target = $region8
    $region5: #{tpu_custom_call.1} parent=1 // loop_body
      %s24 = ssub.s32 %s19, 1
      %s25 = ssub.s32 %s19, 2
      %s26 = sadd.s32 %s19, 1
      %s27 = ssub.s32 %s19, %s26
      %p28 = scmp.eq.s32.totalorder %s27, 0
      %s30 = sadd.s32 %s29, 1
      %s31 = scalar_select %p28, %s29, %s30
      %p34 = pneg %p28
      %p35 = scmp.eq.s32.totalorder %s19, 3
      %p36 = por %p34, %p35
      %p37 = scmp.ne.s32.totalorder %s29, %s32
      %p38 = scmp.eq.s32.totalorder %s19, 0
      %p39 = por %p37, %p38
      %p40 = scmp.ne.s32.totalorder %s29, %s32
      %p41 = scmp.eq.s32.totalorder %s24, 3
      %p42 = por %p40, %p41
      %p43 = scmp.ne.s32.totalorder %s32, %s33
      %p44 = scmp.eq.s32.totalorder %s24, 0
      %p45 = por %p43, %p44
      %p46 = scmp.ne.s32.totalorder %s32, %s33
      %p47 = scmp.eq.s32.totalorder %s25, 3
      %p48 = por %p46, %p47
      %p50 = scmp.ne.s32.totalorder %s33, %s49
      %p51 = scmp.eq.s32.totalorder %s25, 0
      %p52 = por %p50, %p51
      %s54 = sadd.s32 %s53, 1
      %p57 = scmp.eq.s32.totalorder %s19, 3
      %p58 = scmp.ne.s32.totalorder %s53, %s55
      %p59 = scmp.eq.s32.totalorder %s19, 0
      %p60 = por %p58, %p59
      %p61 = scmp.ne.s32.totalorder %s53, %s55
      %p62 = scmp.eq.s32.totalorder %s24, 3
      %p63 = por %p61, %p62
      %p64 = scmp.ne.s32.totalorder %s55, %s56
      %p65 = scmp.eq.s32.totalorder %s24, 0
      %p66 = por %p64, %p65
      %p67 = scmp.ne.s32.totalorder %s55, %s56
      %p68 = scmp.eq.s32.totalorder %s25, 3
      %p69 = por %p67, %p68
      %p71 = scmp.ne.s32.totalorder %s56, %s70
      %p72 = scmp.eq.s32.totalorder %s25, 0
      %p73 = por %p71, %p72
      %s75 = sadd.s32 %s74, 1
      %p78 = scmp.eq.s32.totalorder %s19, 3
      %p79 = scmp.ne.s32.totalorder %s74, %s76
      %p80 = scmp.eq.s32.totalorder %s19, 0
      %p81 = por %p79, %p80
      %p82 = scmp.ne.s32.totalorder %s74, %s76
      %p83 = scmp.eq.s32.totalorder %s24, 3
      %p84 = por %p82, %p83
      %p85 = scmp.ne.s32.totalorder %s76, %s77
      %p86 = scmp.eq.s32.totalorder %s24, 0
      %p87 = por %p85, %p86
      %p88 = scmp.ne.s32.totalorder %s76, %s77
      %p89 = scmp.eq.s32.totalorder %s25, 3
      %p90 = por %p88, %p89
      %p92 = scmp.ne.s32.totalorder %s77, %s91
      %p93 = scmp.eq.s32.totalorder %s25, 0
      %p94 = por %p92, %p93
      %s96 = sadd.s32 %s95, 1
      %p99 = scmp.eq.s32.totalorder %s19, 3
      %p100 = scmp.ne.s32.totalorder %s95, %s97
      %p101 = scmp.eq.s32.totalorder %s19, 0
      %p102 = por %p100, %p101
      %p103 = scmp.ne.s32.totalorder %s95, %s97
      %p104 = scmp.eq.s32.totalorder %s24, 3
      %p105 = por %p103, %p104
      %p106 = scmp.ne.s32.totalorder %s97, %s98
      %p107 = scmp.eq.s32.totalorder %s24, 0
      %p108 = por %p106, %p107
      %p109 = scmp.ne.s32.totalorder %s97, %s98
      %p110 = scmp.eq.s32.totalorder %s25, 3
      %p111 = por %p109, %p110
      %p113 = scmp.ne.s32.totalorder %s98, %s112
      %p114 = scmp.eq.s32.totalorder %s25, 0
      %p115 = por %p113, %p114
      %s117 = sadd.s32 %s116, 1
      %p120 = scmp.eq.s32.totalorder %s19, 3
      %p121 = scmp.ne.s32.totalorder %s116, %s118
      %p122 = scmp.eq.s32.totalorder %s19, 0
      %p123 = por %p121, %p122
      %p124 = scmp.ne.s32.totalorder %s116, %s118
      %p125 = scmp.eq.s32.totalorder %s24, 3
      %p126 = por %p124, %p125
      %p127 = scmp.ne.s32.totalorder %s118, %s119
      %p128 = scmp.eq.s32.totalorder %s24, 0
      %p129 = por %p127, %p128
      %p130 = scmp.ne.s32.totalorder %s118, %s119
      %p131 = scmp.eq.s32.totalorder %s25, 3
      %p132 = por %p130, %p131
      %p134 = scmp.ne.s32.totalorder %s119, %s133
      %p135 = scmp.eq.s32.totalorder %s25, 0
      %p136 = por %p134, %p135
      %s138 = sadd.s32 %s137, 1
      %p141 = scmp.eq.s32.totalorder %s19, 3
      %p142 = scmp.ne.s32.totalorder %s137, %s139
      %p143 = scmp.eq.s32.totalorder %s19, 0
      %p144 = por %p142, %p143
      %p145 = scmp.ne.s32.totalorder %s137, %s139
      %p146 = scmp.eq.s32.totalorder %s24, 3
      %p147 = por %p145, %p146
      %p148 = scmp.ne.s32.totalorder %s139, %s140
      %p149 = scmp.eq.s32.totalorder %s24, 0
      %p150 = por %p148, %p149
      %p151 = scmp.ne.s32.totalorder %s139, %s140
      %p152 = scmp.eq.s32.totalorder %s25, 3
      %p153 = por %p151, %p152
      %p155 = scmp.ne.s32.totalorder %s140, %s154
      %p156 = scmp.eq.s32.totalorder %s25, 0
      %p157 = por %p155, %p156
      %s159 = sadd.s32 %s158, 1
      %p162 = scmp.eq.s32.totalorder %s19, 3
      %p163 = scmp.ne.s32.totalorder %s158, %s160
      %p164 = scmp.eq.s32.totalorder %s19, 0
      %p165 = por %p163, %p164
      %p166 = scmp.ne.s32.totalorder %s158, %s160
      %p167 = scmp.eq.s32.totalorder %s24, 3
      %p168 = por %p166, %p167
      %p169 = scmp.ne.s32.totalorder %s160, %s161
      %p170 = scmp.eq.s32.totalorder %s24, 0
      %p171 = por %p169, %p170
      %p172 = scmp.ne.s32.totalorder %s160, %s161
      %p173 = scmp.eq.s32.totalorder %s25, 3
      %p174 = por %p172, %p173
      %p176 = scmp.ne.s32.totalorder %s161, %s175
      %p177 = scmp.eq.s32.totalorder %s25, 0
      %p178 = por %p176, %p177
      %s179 = ssub.s32 %s19, %s26
      %p180 = scmp.eq.s32.totalorder %s179, 0
      %s182 = sadd.s32 %s181, 1
      %s183 = scalar_select %p180, %s181, %s182
      %p186 = pneg %p180
      %p187 = scmp.eq.s32.totalorder %s19, 3
      %p188 = por %p186, %p187
      %p189 = scmp.ne.s32.totalorder %s181, %s184
      %p190 = scmp.eq.s32.totalorder %s19, 0
      %p191 = por %p189, %p190
      %p192 = scmp.ne.s32.totalorder %s181, %s184
      %p193 = scmp.eq.s32.totalorder %s24, 3
      %p194 = por %p192, %p193
      %p195 = scmp.ne.s32.totalorder %s184, %s185
      %p196 = scmp.eq.s32.totalorder %s24, 0
      %p197 = por %p195, %p196
      %p198 = scmp.ne.s32.totalorder %s184, %s185
      %p199 = scmp.eq.s32.totalorder %s25, 3
      %p200 = por %p198, %p199
      %p202 = scmp.ne.s32.totalorder %s185, %s201
      %p203 = scmp.eq.s32.totalorder %s25, 0
      %p204 = por %p202, %p203
      %p205 = scmp.le.s32.totalorder 1, %s19
      %p206 = scmp.lt.s32.totalorder %s19, 5
      %p207 = pnand %p205, %p206
      %p208 = pneg %p207
      // Predicated region
      $region9: #{tpu_custom_call.1} parent=5 // pred_check
        _
      $region10: #{tpu_custom_call.1} parent=5 // pred_check_branch
        %210 = sbr.rel (%p207) target = $region12
      $region11: #{tpu_custom_call.1} parent=5 // pred_region
        %s211 = ssub.s32 %s19, 1
        // Predicated region
        $region13: #{tpu_custom_call.1} parent=11 // pred_check
          %p212 = pneg %p66
        $region14: #{tpu_custom_call.1} parent=11 // pred_check_branch
          %214 = sbr.rel (%p212) target = $region16
        $region15: #{tpu_custom_call.1} parent=11 // pred_region
          _
        $region16: #{tpu_custom_call.1} parent=11 // pred_fallthru
          _
        // Predicated region
        $region17: #{tpu_custom_call.1} parent=11 // pred_check
          %p215 = pneg %p87
        $region18: #{tpu_custom_call.1} parent=11 // pred_check_branch
          %217 = sbr.rel (%p215) target = $region20
        $region19: #{tpu_custom_call.1} parent=11 // pred_region
          _
        $region20: #{tpu_custom_call.1} parent=11 // pred_fallthru
          _
        // Predicated region
        $region21: #{tpu_custom_call.1} parent=11 // pred_check
          %p218 = pneg %p108
        $region22: #{tpu_custom_call.1} parent=11 // pred_check_branch
          %220 = sbr.rel (%p218) target = $region24
        $region23: #{tpu_custom_call.1} parent=11 // pred_region
          _
        $region24: #{tpu_custom_call.1} parent=11 // pred_fallthru
          _
        // Predicated region
        $region25: #{tpu_custom_call.1} parent=11 // pred_check
          %p221 = pneg %p129
        $region26: #{tpu_custom_call.1} parent=11 // pred_check_branch
          %223 = sbr.rel (%p221) target = $region28
        $region27: #{tpu_custom_call.1} parent=11 // pred_region
          _
        $region28: #{tpu_custom_call.1} parent=11 // pred_fallthru
          _
        // Predicated region
        $region29: #{tpu_custom_call.1} parent=11 // pred_check
          %p224 = pneg %p150
        $region30: #{tpu_custom_call.1} parent=11 // pred_check_branch
          %226 = sbr.rel (%p224) target = $region32
        $region31: #{tpu_custom_call.1} parent=11 // pred_region
          _
        $region32: #{tpu_custom_call.1} parent=11 // pred_fallthru
          _
        // Predicated region
        $region33: #{tpu_custom_call.1} parent=11 // pred_check
          %p227 = pneg %p171
        $region34: #{tpu_custom_call.1} parent=11 // pred_check_branch
          %229 = sbr.rel (%p227) target = $region36
        $region35: #{tpu_custom_call.1} parent=11 // pred_region
          _
        $region36: #{tpu_custom_call.1} parent=11 // pred_fallthru
          _
      $region12: #{tpu_custom_call.1} parent=5 // pred_fallthru
        _
      %p230 = scmp.lt.s32.totalorder %s19, 4
      // Predicated region
      $region37: #{tpu_custom_call.1} parent=5 // pred_check
        %p231 = pneg %p230
      $region38: #{tpu_custom_call.1} parent=5 // pred_check_branch
        %233 = sbr.rel (%p231) target = $region40
      $region39: #{tpu_custom_call.1} parent=5 // pred_region
        // Predicated region
        $region41: #{tpu_custom_call.1} parent=39 // pred_check
          %p234 = pneg %p39
        $region42: #{tpu_custom_call.1} parent=39 // pred_check_branch
          %236 = sbr.rel (%p234) target = $region44
        $region43: #{tpu_custom_call.1} parent=39 // pred_region
          %s237 = sand.u32 %s29, 1
          %s238 = scalar_lea.sflag [#allocation3], %s237
          %s239 = sand.u32 %s29, 1
          %s240 = smul.addr %s239, 32
          %s241 = scalar_lea.vmem [#allocation2], %s240
          %s242 = smul.u32 2, %s19
          %s244 = ssub.s32 512, 512
          %245 = vsyncadd %s238, %s244
          %s246 = smul.addr %s242, 4
          %s247 = smul.addr %s246, 64
          %s248 = scalar_lea.hbm %s0, %s247
          %s249 = sshll.u32 %s241, 4
          %s250 = int_to_ptr.vmem [resolvable:$true] %s249
          %255 = dma.hbm_to_vmem [thread:$0]  %s248, 512, %s250, %s238, 64, 64, 4
        $region44: #{tpu_custom_call.1} parent=39 // pred_fallthru
          _
      $region40: #{tpu_custom_call.1} parent=5 // pred_fallthru
        _
      %p256 = scmp.le.s32.totalorder 1, %s19
      %p257 = scmp.lt.s32.totalorder %s19, 5
      %p258 = pnand %p256, %p257
      %p259 = pneg %p258
      // Predicated region
      $region45: #{tpu_custom_call.1} parent=5 // pred_check
        _
      $region46: #{tpu_custom_call.1} parent=5 // pred_check_branch
        %261 = sbr.rel (%p258) target = $region48
      $region47: #{tpu_custom_call.1} parent=5 // pred_region
        %s262 = ssub.s32 %s19, 1
        %s263 = sand.u32 %s32, 1
        %s264 = scalar_lea.sflag [#allocation3], %s263
        %s265 = sand.u32 %s32, 1
        %s266 = smul.addr %s265, 32
        %s267 = scalar_lea.vmem [#allocation2], %s266
        // Predicated region
        $region49: #{tpu_custom_call.1} parent=47 // pred_check
          %p268 = pneg %p45
        $region50: #{tpu_custom_call.1} parent=47 // pred_check_branch
          %270 = sbr.rel (%p268) target = $region52
        $region51: #{tpu_custom_call.1} parent=47 // pred_region
          %271 = dma.done %s264, 512
        $region52: #{tpu_custom_call.1} parent=47 // pred_fallthru
          _
        %s272 = sand.u32 %s32, 1
        %s273 = scalar_lea.sflag [#allocation3], %s272
        %s274 = sand.u32 %s32, 1
        %s275 = smul.addr %s274, 32
        %s276 = scalar_lea.vmem [#allocation2], %s275
        %p277 = pneg %p45
        %p278 = pneg %p42
        %p279 = pneg %p66
        %p280 = pneg %p63
        %p281 = pneg %p87
        %p282 = pneg %p84
        %p283 = pneg %p108
        %p284 = pneg %p105
        %p285 = pneg %p129
        %p286 = pneg %p126
        %p287 = pneg %p150
        %p288 = pneg %p147
        %p289 = pneg %p171
        %p290 = pneg %p168
        %p291 = pneg %p197
        %p292 = pneg %p194
        %s293 = sand.u32 %s184, 1
        %s294 = scalar_lea.sflag [#allocation4], %s293
        %s295 = sand.u32 %s184, 1
        %s296 = smul.addr %s295, 32
        %s297 = scalar_lea.vmem [#allocation5], %s296
        %s298 = smul.u32 2, %s24
        %s299 = smul.u32 2, %s24
        %v301 = vld [vmem:[%s1] sm:$0xf]
        %v302 = vld [vmem:[%s1 + $0x4] sm:$0xf]
        %v303 = vld [vmem:[%s1 + $0x8] sm:$0xf]
        %v304 = vld [vmem:[%s1 + $0xc] sm:$0xf]
        %v305 = vld [vmem:[%s3] sm:$0xf]
        %v306 = vld [vmem:[%s3 + $0x4] sm:$0xf]
        %v307 = vld [vmem:[%s3 + $0x8] sm:$0xf]
        %v308 = vld [vmem:[%s3 + $0xc] sm:$0xf]
        %v309 = vld [vmem:[%s5] sm:$0xf]
        %v310 = vld [vmem:[%s6] sm:$0xf]
        %v311 = vld [vmem:[%s6 + $0x4] sm:$0xf]
        %v312 = vld [vmem:[%s6 + $0x8] sm:$0xf]
        %v313 = vld [vmem:[%s6 + $0xc] sm:$0xf]
        %v314 = vld [vmem:[%s2] sm:$0xff]
        %v315 = vld [vmem:[%s2 + $0x8] sm:$0xff]
        %v316 = vld [vmem:[%s2 + $0x10] sm:$0xff]
        %v317 = vld [vmem:[%s2 + $0x18] sm:$0xff]
        %v318 = vld [vmem:[%s4] sm:$0xff]
        %v319 = vld [vmem:[%s4 + $0x8] sm:$0xff]
        %v320 = vld [vmem:[%s4 + $0x10] sm:$0xff]
        %v321 = vld [vmem:[%s4 + $0x18] sm:$0xff]
        %v322 = vld [vmem:[%s267] sm:$0xf]
        %v323 = vld [vmem:[%s267 + $0x4] sm:$0xf]
        %v324 = vld [vmem:[%s267 + $0x8] sm:$0xf]
        %v325 = vld [vmem:[%s267 + $0xc] sm:$0xf]
        %327 = vset.pattern.permute.xlu0 0
        %328 = vperm.xlu0 %327, %v314
        %v329 = vpop.permute.xlu0 %328
        %332 = vset.pattern.permute.xlu0 0
        %333 = vperm.xlu0 %332, %v315
        %v334 = vpop.permute.xlu0 %333
        %337 = vset.pattern.permute.xlu0 0
        %338 = vperm.xlu0 %337, %v316
        %v339 = vpop.permute.xlu0 %338
        %342 = vset.pattern.permute.xlu0 0
        %343 = vperm.xlu0 %342, %v317
        %v344 = vpop.permute.xlu0 %343
        %v350 = vunpack.c.l.b16 %v301
        %v351 = vunpack.c.l.b16 %v302
        %v352 = vunpack.c.l.b16 %v303
        %v353 = vunpack.c.l.b16 %v304
        %v354 = vpack.c.b16 %v351, %v350
        %v355 = vpack.c.b16 %v353, %v352
        %v360 = vunpack.c.l.b16 %v322
        %v361 = vunpack.c.l.b16 %v323
        %v362 = vunpack.c.l.b16 %v324
        %v363 = vunpack.c.l.b16 %v325
        %v364 = vpack.c.b16 %v361, %v360
        %v365 = vpack.c.b16 %v363, %v362
        %vm368 = vcmask 261120
        %v370 = vsel %vm368, %v354, 0
        %v373 = vsel %vm368, %v355, 0
        %375 = vmatprep.subr.bf16.mxu0 0
        %376 = vmatpush1.bf16.msra.mxu0 %v364
        %377 = vmatprep.subr.bf16.mxu0 0
        %378 = vmatpush1.bf16.msra.mxu0 %v365
        %379 = vmatprep.subr.bf16.mxu0 0
        %380 = vmatpush1.bf16.msra.mxu0 0
        %381 = vmatprep.subr.bf16.mxu0 0
        %382 = vmatpush1.bf16.msra.mxu0 0
        %383 = vmatprep.subr.bf16.mxu0 0
        %384 = vmatpush1.bf16.msra.mxu0 0
        %385 = vmatprep.subr.bf16.mxu0 0
        %386 = vmatpush1.bf16.msra.mxu0 0
        %387 = vmatprep.subr.bf16.mxu0 0
        %388 = vmatpush1.bf16.msra.mxu0 0
        %389 = vmatprep.subr.bf16.mxu0 0
        %390 = vmatpush1.bf16.msra.mxu0 0
        %391 = vmatprep.subr.bf16.mxu0 0
        %392 = vmatpush1.bf16.msra.mxu0 0
        %393 = vmatprep.subr.bf16.mxu0 0
        %394 = vmatpush1.bf16.msra.mxu0 0
        %395 = vmatprep.subr.bf16.mxu0 0
        %396 = vmatpush1.bf16.msra.mxu0 0
        %397 = vmatprep.subr.bf16.mxu0 0
        %398 = vmatpush1.bf16.msra.mxu0 0
        %399 = vmatprep.subr.bf16.mxu0 0
        %400 = vmatpush1.bf16.msra.mxu0 0
        %401 = vmatprep.subr.bf16.mxu0 0
        %402 = vmatpush1.bf16.msra.mxu0 0
        %403 = vmatprep.subr.bf16.mxu0 0
        %404 = vmatpush1.bf16.msra.mxu0 0
        %405 = vmatprep.subr.bf16.mxu0 0
        %406 = vmatpush1.bf16.msra.mxu0 0
        %407 = vmatprep.mubr.bf16.mxu0 0
        %408 = vmatmul.mubr.bf16.gmra.mrb[0].mxu0 %v370
        %v409 = vpop.f32.mrb[0].mxu0
        %v410 = vadd.f32 %v329, %v409
        %v411 = vpop.f32.mrb[0].mxu0
        %v412 = vpop.f32.mrb[0].mxu0
        %v413 = vadd.f32 %v334, %v412
        %v414 = vpop.f32.mrb[0].mxu0
        %415 = vmatprep.mubr.bf16.mxu0 0
        %416 = vmatmul.mubr.bf16.gmra.mrb[0].mxu0 %v373
        %v417 = vpop.f32.mrb[0].mxu0
        %v418 = vadd.f32 %v339, %v417
        %v419 = vpop.f32.mrb[0].mxu0
        %v420 = vpop.f32.mrb[0].mxu0
        %v421 = vadd.f32 %v344, %v420
        %v422 = vpop.f32.mrb[0].mxu0
        %423 = vdwg.mxu0
        %v424 = vmax.f32 %v410, 0.0
        %v425 = vmax.f32 %v413, 0.0
        %v426 = vmax.f32 %v418, 0.0
        %v427 = vmax.f32 %v421, 0.0
        %v428 = vpack.c.bf16 %v425, %v424
        %v429 = vpack.c.bf16 %v427, %v426
        %431 = vset.pattern.permute.xlu0 0
        %432 = vperm.xlu0 %431, %v318
        %v433 = vpop.permute.xlu0 %432
        %436 = vset.pattern.permute.xlu0 0
        %437 = vperm.xlu0 %436, %v319
        %v438 = vpop.permute.xlu0 %437
        %441 = vset.pattern.permute.xlu0 0
        %442 = vperm.xlu0 %441, %v320
        %v443 = vpop.permute.xlu0 %442
        %446 = vset.pattern.permute.xlu0 0
        %447 = vperm.xlu0 %446, %v321
        %v448 = vpop.permute.xlu0 %447
        %v454 = vunpack.c.l.b16 %v305
        %v455 = vunpack.c.l.b16 %v306
        %v456 = vunpack.c.l.b16 %v307
        %v457 = vunpack.c.l.b16 %v308
        %v458 = vpack.c.b16 %v455, %v454
        %v459 = vpack.c.b16 %v457, %v456
        %v461 = vsel %vm368, %v458, 0
        %v464 = vsel %vm368, %v459, 0
        %466 = vmatprep.subr.bf16.mxu0 0
        %467 = vmatpush1.bf16.msra.mxu0 %v428
        %468 = vmatprep.subr.bf16.mxu0 0
        %469 = vmatpush1.bf16.msra.mxu0 %v429
        %470 = vmatprep.subr.bf16.mxu0 0
        %471 = vmatpush1.bf16.msra.mxu0 0
        %472 = vmatprep.subr.bf16.mxu0 0
        %473 = vmatpush1.bf16.msra.mxu0 0
        %474 = vmatprep.subr.bf16.mxu0 0
        %475 = vmatpush1.bf16.msra.mxu0 0
        %476 = vmatprep.subr.bf16.mxu0 0
        %477 = vmatpush1.bf16.msra.mxu0 0
        %478 = vmatprep.subr.bf16.mxu0 0
        %479 = vmatpush1.bf16.msra.mxu0 0
        %480 = vmatprep.subr.bf16.mxu0 0
        %481 = vmatpush1.bf16.msra.mxu0 0
        %482 = vmatprep.subr.bf16.mxu0 0
        %483 = vmatpush1.bf16.msra.mxu0 0
        %484 = vmatprep.subr.bf16.mxu0 0
        %485 = vmatpush1.bf16.msra.mxu0 0
        %486 = vmatprep.subr.bf16.mxu0 0
        %487 = vmatpush1.bf16.msra.mxu0 0
        %488 = vmatprep.subr.bf16.mxu0 0
        %489 = vmatpush1.bf16.msra.mxu0 0
        %490 = vmatprep.subr.bf16.mxu0 0
        %491 = vmatpush1.bf16.msra.mxu0 0
        %492 = vmatprep.subr.bf16.mxu0 0
        %493 = vmatpush1.bf16.msra.mxu0 0
        %494 = vmatprep.subr.bf16.mxu0 0
        %495 = vmatpush1.bf16.msra.mxu0 0
        %496 = vmatprep.subr.bf16.mxu0 0
        %497 = vmatpush1.bf16.msra.mxu0 0
        %498 = vmatprep.mubr.bf16.mxu0 0
        %499 = vmatmul.mubr.bf16.gmra.mrb[0].mxu0 %v461
        %v500 = vpop.f32.mrb[0].mxu0
        %v501 = vadd.f32 %v433, %v500
        %v502 = vpop.f32.mrb[0].mxu0
        %v503 = vpop.f32.mrb[0].mxu0
        %v504 = vadd.f32 %v438, %v503
        %v505 = vpop.f32.mrb[0].mxu0
        %506 = vmatprep.mubr.bf16.mxu0 0
        %507 = vmatmul.mubr.bf16.gmra.mrb[0].mxu0 %v464
        %v508 = vpop.f32.mrb[0].mxu0
        %v509 = vadd.f32 %v443, %v508
        %v510 = vpop.f32.mrb[0].mxu0
        %v511 = vpop.f32.mrb[0].mxu0
        %v512 = vadd.f32 %v448, %v511
        %v513 = vpop.f32.mrb[0].mxu0
        %514 = vdwg.mxu0
        %515 = vadd.xlane.f32.xlu0 %v501
        %v516 = vpop.xlane.xlu0 %515
        %517 = vadd.xlane.f32.xlu0 %v504
        %v518 = vpop.xlane.xlu0 %517
        %519 = vadd.xlane.f32.xlu0 %v509
        %v520 = vpop.xlane.xlu0 %519
        %521 = vadd.xlane.f32.xlu0 %v512
        %v522 = vpop.xlane.xlu0 %521
        %v523 = vrcp.pop 128.0
        %v524 = vmul.f32 %v516, %v523
        %v525 = vmul.f32 %v518, %v523
        %v526 = vmul.f32 %v520, %v523
        %v527 = vmul.f32 %v522, %v523
        %v528 = vpack.c.bf16 %v525, %v524
        %v529 = vpack.c.bf16 %v527, %v526
        %v531 = vsel %vm368, %v309, 0
        %533 = vmatprep.subr.bf16.mxu0 0
        %534 = vmatpush1.bf16.msra.mxu0 %v528
        %535 = vmatprep.subr.bf16.mxu0 0
        %536 = vmatpush1.bf16.msra.mxu0 %v529
        %537 = vmatprep.subr.bf16.mxu0 0
        %538 = vmatpush1.bf16.msra.mxu0 0
        %539 = vmatprep.subr.bf16.mxu0 0
        %540 = vmatpush1.bf16.msra.mxu0 0
        %541 = vmatprep.subr.bf16.mxu0 0
        %542 = vmatpush1.bf16.msra.mxu0 0
        %543 = vmatprep.subr.bf16.mxu0 0
        %544 = vmatpush1.bf16.msra.mxu0 0
        %545 = vmatprep.subr.bf16.mxu0 0
        %546 = vmatpush1.bf16.msra.mxu0 0
        %547 = vmatprep.subr.bf16.mxu0 0
        %548 = vmatpush1.bf16.msra.mxu0 0
        %549 = vmatprep.subr.bf16.mxu0 0
        %550 = vmatpush1.bf16.msra.mxu0 0
        %551 = vmatprep.subr.bf16.mxu0 0
        %552 = vmatpush1.bf16.msra.mxu0 0
        %553 = vmatprep.subr.bf16.mxu0 0
        %554 = vmatpush1.bf16.msra.mxu0 0
        %555 = vmatprep.subr.bf16.mxu0 0
        %556 = vmatpush1.bf16.msra.mxu0 0
        %557 = vmatprep.subr.bf16.mxu0 0
        %558 = vmatpush1.bf16.msra.mxu0 0
        %559 = vmatprep.subr.bf16.mxu0 0
        %560 = vmatpush1.bf16.msra.mxu0 0
        %561 = vmatprep.subr.bf16.mxu0 0
        %562 = vmatpush1.bf16.msra.mxu0 0
        %563 = vmatprep.subr.bf16.mxu0 0
        %564 = vmatpush1.bf16.msra.mxu0 0
        %565 = vmatprep.mubr.bf16.mxu0 0
        %566 = vmatmul.mubr.bf16.gmra.mrb[0].mxu0 %v531
        %v567 = vpop.f32.mrb[0].mxu0
        %v568 = vadd.f32 0.0, %v567
        %v569 = vpop.f32.mrb[0].mxu0
        %v570 = vpop.f32.mrb[0].mxu0
        %v571 = vpop.f32.mrb[0].mxu0
        %572 = vdwg.mxu0
        %v573 = vmax.f32 %v568, 0.0
        %v574 = vpack.c.bf16 %v573, %v573
        %v579 = vunpack.c.l.b16 %v310
        %v580 = vunpack.c.l.b16 %v311
        %v581 = vunpack.c.l.b16 %v312
        %v582 = vunpack.c.l.b16 %v313
        %v583 = vpack.c.b16 %v580, %v579
        %v584 = vpack.c.b16 %v582, %v581
        %vm585 = vcmask 64512
        %v587 = vsel %vm585, %v583, 0
        %v590 = vsel %vm585, %v584, 0
        %vm592 = vcmask 1043456
        %v594 = vsel %vm592, %v574, 0
        %596 = vmatprep.subr.bf16.mxu0 0
        %597 = vmatpush1.bf16.msra.mxu0 %v594
        %598 = vmatprep.subr.bf16.mxu0 0
        %599 = vmatpush1.bf16.msra.mxu0 0
        %600 = vmatprep.subr.bf16.mxu0 0
        %601 = vmatpush1.bf16.msra.mxu0 0
        %602 = vmatprep.subr.bf16.mxu0 0
        %603 = vmatpush1.bf16.msra.mxu0 0
        %604 = vmatprep.subr.bf16.mxu0 0
        %605 = vmatpush1.bf16.msra.mxu0 0
        %606 = vmatprep.subr.bf16.mxu0 0
        %607 = vmatpush1.bf16.msra.mxu0 0
        %608 = vmatprep.subr.bf16.mxu0 0
        %609 = vmatpush1.bf16.msra.mxu0 0
        %610 = vmatprep.subr.bf16.mxu0 0
        %611 = vmatpush1.bf16.msra.mxu0 0
        %612 = vmatprep.subr.bf16.mxu0 0
        %613 = vmatpush1.bf16.msra.mxu0 0
        %614 = vmatprep.subr.bf16.mxu0 0
        %615 = vmatpush1.bf16.msra.mxu0 0
        %616 = vmatprep.subr.bf16.mxu0 0
        %617 = vmatpush1.bf16.msra.mxu0 0
        %618 = vmatprep.subr.bf16.mxu0 0
        %619 = vmatpush1.bf16.msra.mxu0 0
        %620 = vmatprep.subr.bf16.mxu0 0
        %621 = vmatpush1.bf16.msra.mxu0 0
        %622 = vmatprep.subr.bf16.mxu0 0
        %623 = vmatpush1.bf16.msra.mxu0 0
        %624 = vmatprep.subr.bf16.mxu0 0
        %625 = vmatpush1.bf16.msra.mxu0 0
        %626 = vmatprep.subr.bf16.mxu0 0
        %627 = vmatpush1.bf16.msra.mxu0 0
        %628 = vmatprep.mubr.bf16.mxu0 0
        %629 = vmatmul.mubr.bf16.gmra.mrb[0].mxu0 %v587
        %v630 = vpop.f32.mrb[0].mxu0
        %v631 = vadd.f32 0.0, %v630
        %v632 = vpop.f32.mrb[0].mxu0
        %v633 = vpop.f32.mrb[0].mxu0
        %v634 = vadd.f32 0.0, %v633
        %v635 = vpop.f32.mrb[0].mxu0
        %636 = vmatprep.mubr.bf16.mxu0 0
        %637 = vmatmul.mubr.bf16.gmra.mrb[0].mxu0 %v590
        %v638 = vpop.f32.mrb[0].mxu0
        %v639 = vadd.f32 0.0, %v638
        %v640 = vpop.f32.mrb[0].mxu0
        %v641 = vpop.f32.mrb[0].mxu0
        %v642 = vadd.f32 0.0, %v641
        %v643 = vpop.f32.mrb[0].mxu0
        %644 = vdwg.mxu0
        %v645 = vxor.u32 %v631, 2147483648
        %v646 = vxor.u32 %v634, 2147483648
        %v647 = vxor.u32 %v639, 2147483648
        %v648 = vxor.u32 %v642, 2147483648
        %v649 = vmul.f32 %v645, 1.442695
        %v650 = vpow.pop %v649
        %v651 = vmul.f32 %v646, 1.442695
        %v652 = vpow.pop %v651
        %v653 = vmul.f32 %v647, 1.442695
        %v654 = vpow.pop %v653
        %v655 = vmul.f32 %v648, 1.442695
        %v656 = vpow.pop %v655
        %v657 = vadd.f32 %v650, 1.0
        %v658 = vadd.f32 %v652, 1.0
        %v659 = vadd.f32 %v654, 1.0
        %v660 = vadd.f32 %v656, 1.0
        %v661 = vrcp.pop %v657
        %v662 = vmul.f32 1.0, %v661
        %v663 = vrcp.pop %v658
        %v664 = vmul.f32 1.0, %v663
        %v665 = vrcp.pop %v659
        %v666 = vmul.f32 1.0, %v665
        %v667 = vrcp.pop %v660
        %v668 = vmul.f32 1.0, %v667
        %670 = vset.pattern.permute.xlu0 0
        %671 = vperm.xlu0 %670, %v662
        %v672 = vpop.permute.xlu0 %671
        %675 = vset.pattern.permute.xlu0 0
        %676 = vperm.xlu0 %675, %v664
        %v677 = vpop.permute.xlu0 %676
        %680 = vset.pattern.permute.xlu0 0
        %681 = vperm.xlu0 %680, %v666
        %v682 = vpop.permute.xlu0 %681
        %685 = vset.pattern.permute.xlu0 0
        %686 = vperm.xlu0 %685, %v668
        %v687 = vpop.permute.xlu0 %686
        %v689 = vmul.f32 %v501, %v672
        %v690 = vmul.f32 %v504, %v677
        %v691 = vmul.f32 %v509, %v682
        %v692 = vmul.f32 %v512, %v687
        %v693 = vunpack.c.l.bf16 %v322
        %v694 = vunpack.c.l.bf16 %v323
        %v695 = vunpack.c.l.bf16 %v324
        %v696 = vunpack.c.l.bf16 %v325
        %v697 = vadd.f32 %v689, %v693
        %v698 = vadd.f32 %v690, %v694
        %v699 = vadd.f32 %v691, %v695
        %v700 = vadd.f32 %v692, %v696
        %v701 = vmax.f32 %v697, 0.0
        %v702 = vmax.f32 %v698, 0.0
        %v703 = vmax.f32 %v699, 0.0
        %v704 = vmax.f32 %v700, 0.0
        %v705 = vpack.c.bf16 %v702, %v701
        %v706 = vpack.c.bf16 %v704, %v703
        %v709 = vunpack.c.l.b16 %v705
        %v710 = vunpack.c.h.b16 %v705
        %v711 = vunpack.c.l.b16 %v706
        %v712 = vunpack.c.h.b16 %v706
        %v713 = vpack.c.b16 %v709, %v709
        %v714 = vpack.c.b16 %v710, %v710
        %v715 = vpack.c.b16 %v711, %v711
        %v716 = vpack.c.b16 %v712, %v712
        %721 = vst [vmem:[%s297] sm:$0xf] %v713
        %722 = vst [vmem:[%s297 + $0x4] sm:$0xf] %v714
        %723 = vst [vmem:[%s297 + $0x8] sm:$0xf] %v715
        %724 = vst [vmem:[%s297 + $0xc] sm:$0xf] %v716
        %s725 = scalar_lea.vmem %s267, 16 [#allocation2]
        %v726 = vld [vmem:[%s725] sm:$0xf]
        %v727 = vld [vmem:[%s725 + $0x4] sm:$0xf]
        %v728 = vld [vmem:[%s725 + $0x8] sm:$0xf]
        %v729 = vld [vmem:[%s725 + $0xc] sm:$0xf]
        %v734 = vunpack.c.l.b16 %v726
        %v735 = vunpack.c.l.b16 %v727
        %v736 = vunpack.c.l.b16 %v728
        %v737 = vunpack.c.l.b16 %v729
        %v738 = vpack.c.b16 %v735, %v734
        %v739 = vpack.c.b16 %v737, %v736
        %742 = vmatprep.subr.bf16.mxu0 0
        %743 = vmatpush1.bf16.msra.mxu0 %v738
        %744 = vmatprep.subr.bf16.mxu0 0
        %745 = vmatpush1.bf16.msra.mxu0 %v739
        %746 = vmatprep.subr.bf16.mxu0 0
        %747 = vmatpush1.bf16.msra.mxu0 0
        %748 = vmatprep.subr.bf16.mxu0 0
        %749 = vmatpush1.bf16.msra.mxu0 0
        %750 = vmatprep.subr.bf16.mxu0 0
        %751 = vmatpush1.bf16.msra.mxu0 0
        %752 = vmatprep.subr.bf16.mxu0 0
        %753 = vmatpush1.bf16.msra.mxu0 0
        %754 = vmatprep.subr.bf16.mxu0 0
        %755 = vmatpush1.bf16.msra.mxu0 0
        %756 = vmatprep.subr.bf16.mxu0 0
        %757 = vmatpush1.bf16.msra.mxu0 0
        %758 = vmatprep.subr.bf16.mxu0 0
        %759 = vmatpush1.bf16.msra.mxu0 0
        %760 = vmatprep.subr.bf16.mxu0 0
        %761 = vmatpush1.bf16.msra.mxu0 0
        %762 = vmatprep.subr.bf16.mxu0 0
        %763 = vmatpush1.bf16.msra.mxu0 0
        %764 = vmatprep.subr.bf16.mxu0 0
        %765 = vmatpush1.bf16.msra.mxu0 0
        %766 = vmatprep.subr.bf16.mxu0 0
        %767 = vmatpush1.bf16.msra.mxu0 0
        %768 = vmatprep.subr.bf16.mxu0 0
        %769 = vmatpush1.bf16.msra.mxu0 0
        %770 = vmatprep.subr.bf16.mxu0 0
        %771 = vmatpush1.bf16.msra.mxu0 0
        %772 = vmatprep.subr.bf16.mxu0 0
        %773 = vmatpush1.bf16.msra.mxu0 0
        %774 = vmatprep.mubr.bf16.mxu0 0
        %775 = vmatmul.mubr.bf16.gmra.mrb[0].mxu0 %v370
        %v776 = vpop.f32.mrb[0].mxu0
        %v777 = vadd.f32 %v329, %v776
        %v778 = vpop.f32.mrb[0].mxu0
        %v779 = vpop.f32.mrb[0].mxu0
        %v780 = vadd.f32 %v334, %v779
        %v781 = vpop.f32.mrb[0].mxu0
        %782 = vmatprep.mubr.bf16.mxu0 0
        %783 = vmatmul.mubr.bf16.gmra.mrb[0].mxu0 %v373
        %v784 = vpop.f32.mrb[0].mxu0
        %v785 = vadd.f32 %v339, %v784
        %v786 = vpop.f32.mrb[0].mxu0
        %v787 = vpop.f32.mrb[0].mxu0
        %v788 = vadd.f32 %v344, %v787
        %v789 = vpop.f32.mrb[0].mxu0
        %790 = vdwg.mxu0
        %v791 = vmax.f32 %v777, 0.0
        %v792 = vmax.f32 %v780, 0.0
        %v793 = vmax.f32 %v785, 0.0
        %v794 = vmax.f32 %v788, 0.0
        %v795 = vpack.c.bf16 %v792, %v791
        %v796 = vpack.c.bf16 %v794, %v793
        %797 = vmatprep.subr.bf16.mxu0 0
        %798 = vmatpush1.bf16.msra.mxu0 %v795
        %799 = vmatprep.subr.bf16.mxu0 0
        %800 = vmatpush1.bf16.msra.mxu0 %v796
        %801 = vmatprep.subr.bf16.mxu0 0
        %802 = vmatpush1.bf16.msra.mxu0 0
        %803 = vmatprep.subr.bf16.mxu0 0
        %804 = vmatpush1.bf16.msra.mxu0 0
        %805 = vmatprep.subr.bf16.mxu0 0
        %806 = vmatpush1.bf16.msra.mxu0 0
        %807 = vmatprep.subr.bf16.mxu0 0
        %808 = vmatpush1.bf16.msra.mxu0 0
        %809 = vmatprep.subr.bf16.mxu0 0
        %810 = vmatpush1.bf16.msra.mxu0 0
        %811 = vmatprep.subr.bf16.mxu0 0
        %812 = vmatpush1.bf16.msra.mxu0 0
        %813 = vmatprep.subr.bf16.mxu0 0
        %814 = vmatpush1.bf16.msra.mxu0 0
        %815 = vmatprep.subr.bf16.mxu0 0
        %816 = vmatpush1.bf16.msra.mxu0 0
        %817 = vmatprep.subr.bf16.mxu0 0
        %818 = vmatpush1.bf16.msra.mxu0 0
        %819 = vmatprep.subr.bf16.mxu0 0
        %820 = vmatpush1.bf16.msra.mxu0 0
        %821 = vmatprep.subr.bf16.mxu0 0
        %822 = vmatpush1.bf16.msra.mxu0 0
        %823 = vmatprep.subr.bf16.mxu0 0
        %824 = vmatpush1.bf16.msra.mxu0 0
        %825 = vmatprep.subr.bf16.mxu0 0
        %826 = vmatpush1.bf16.msra.mxu0 0
        %827 = vmatprep.subr.bf16.mxu0 0
        %828 = vmatpush1.bf16.msra.mxu0 0
        %829 = vmatprep.mubr.bf16.mxu0 0
        %830 = vmatmul.mubr.bf16.gmra.mrb[0].mxu0 %v461
        %v831 = vpop.f32.mrb[0].mxu0
        %v832 = vadd.f32 %v433, %v831
        %v833 = vpop.f32.mrb[0].mxu0
        %v834 = vpop.f32.mrb[0].mxu0
        %v835 = vadd.f32 %v438, %v834
        %v836 = vpop.f32.mrb[0].mxu0
        %837 = vmatprep.mubr.bf16.mxu0 0
        %838 = vmatmul.mubr.bf16.gmra.mrb[0].mxu0 %v464
        %v839 = vpop.f32.mrb[0].mxu0
        %v840 = vadd.f32 %v443, %v839
        %v841 = vpop.f32.mrb[0].mxu0
        %v842 = vpop.f32.mrb[0].mxu0
        %v843 = vadd.f32 %v448, %v842
        %v844 = vpop.f32.mrb[0].mxu0
        %845 = vdwg.mxu0
        %846 = vadd.xlane.f32.xlu0 %v832
        %v847 = vpop.xlane.xlu0 %846
        %848 = vadd.xlane.f32.xlu0 %v835
        %v849 = vpop.xlane.xlu0 %848
        %850 = vadd.xlane.f32.xlu0 %v840
        %v851 = vpop.xlane.xlu0 %850
        %852 = vadd.xlane.f32.xlu0 %v843
        %v853 = vpop.xlane.xlu0 %852
        %v854 = vmul.f32 %v847, %v523
        %v855 = vmul.f32 %v849, %v523
        %v856 = vmul.f32 %v851, %v523
        %v857 = vmul.f32 %v853, %v523
        %v858 = vpack.c.bf16 %v855, %v854
        %v859 = vpack.c.bf16 %v857, %v856
        %860 = vmatprep.subr.bf16.mxu0 0
        %861 = vmatpush1.bf16.msra.mxu0 %v858
        %862 = vmatprep.subr.bf16.mxu0 0
        %863 = vmatpush1.bf16.msra.mxu0 %v859
        %864 = vmatprep.subr.bf16.mxu0 0
        %865 = vmatpush1.bf16.msra.mxu0 0
        %866 = vmatprep.subr.bf16.mxu0 0
        %867 = vmatpush1.bf16.msra.mxu0 0
        %868 = vmatprep.subr.bf16.mxu0 0
        %869 = vmatpush1.bf16.msra.mxu0 0
        %870 = vmatprep.subr.bf16.mxu0 0
        %871 = vmatpush1.bf16.msra.mxu0 0
        %872 = vmatprep.subr.bf16.mxu0 0
        %873 = vmatpush1.bf16.msra.mxu0 0
        %874 = vmatprep.subr.bf16.mxu0 0
        %875 = vmatpush1.bf16.msra.mxu0 0
        %876 = vmatprep.subr.bf16.mxu0 0
        %877 = vmatpush1.bf16.msra.mxu0 0
        %878 = vmatprep.subr.bf16.mxu0 0
        %879 = vmatpush1.bf16.msra.mxu0 0
        %880 = vmatprep.subr.bf16.mxu0 0
        %881 = vmatpush1.bf16.msra.mxu0 0
        %882 = vmatprep.subr.bf16.mxu0 0
        %883 = vmatpush1.bf16.msra.mxu0 0
        %884 = vmatprep.subr.bf16.mxu0 0
        %885 = vmatpush1.bf16.msra.mxu0 0
        %886 = vmatprep.subr.bf16.mxu0 0
        %887 = vmatpush1.bf16.msra.mxu0 0
        %888 = vmatprep.subr.bf16.mxu0 0
        %889 = vmatpush1.bf16.msra.mxu0 0
        %890 = vmatprep.subr.bf16.mxu0 0
        %891 = vmatpush1.bf16.msra.mxu0 0
        %892 = vmatprep.mubr.bf16.mxu0 0
        %893 = vmatmul.mubr.bf16.gmra.mrb[0].mxu0 %v531
        %v894 = vpop.f32.mrb[0].mxu0
        %v895 = vadd.f32 0.0, %v894
        %v896 = vpop.f32.mrb[0].mxu0
        %v897 = vpop.f32.mrb[0].mxu0
        %v898 = vpop.f32.mrb[0].mxu0
        %899 = vdwg.mxu0
        %v900 = vmax.f32 %v895, 0.0
        %v901 = vpack.c.bf16 %v900, %v900
        %v903 = vsel %vm592, %v901, 0
        %905 = vmatprep.subr.bf16.mxu0 0
        %906 = vmatpush1.bf16.msra.mxu0 %v903
        %907 = vmatprep.subr.bf16.mxu0 0
        %908 = vmatpush1.bf16.msra.mxu0 0
        %909 = vmatprep.subr.bf16.mxu0 0
        %910 = vmatpush1.bf16.msra.mxu0 0
        %911 = vmatprep.subr.bf16.mxu0 0
        %912 = vmatpush1.bf16.msra.mxu0 0
        %913 = vmatprep.subr.bf16.mxu0 0
        %914 = vmatpush1.bf16.msra.mxu0 0
        %915 = vmatprep.subr.bf16.mxu0 0
        %916 = vmatpush1.bf16.msra.mxu0 0
        %917 = vmatprep.subr.bf16.mxu0 0
        %918 = vmatpush1.bf16.msra.mxu0 0
        %919 = vmatprep.subr.bf16.mxu0 0
        %920 = vmatpush1.bf16.msra.mxu0 0
        %921 = vmatprep.subr.bf16.mxu0 0
        %922 = vmatpush1.bf16.msra.mxu0 0
        %923 = vmatprep.subr.bf16.mxu0 0
        %924 = vmatpush1.bf16.msra.mxu0 0
        %925 = vmatprep.subr.bf16.mxu0 0
        %926 = vmatpush1.bf16.msra.mxu0 0
        %927 = vmatprep.subr.bf16.mxu0 0
        %928 = vmatpush1.bf16.msra.mxu0 0
        %929 = vmatprep.subr.bf16.mxu0 0
        %930 = vmatpush1.bf16.msra.mxu0 0
        %931 = vmatprep.subr.bf16.mxu0 0
        %932 = vmatpush1.bf16.msra.mxu0 0
        %933 = vmatprep.subr.bf16.mxu0 0
        %934 = vmatpush1.bf16.msra.mxu0 0
        %935 = vmatprep.subr.bf16.mxu0 0
        %936 = vmatpush1.bf16.msra.mxu0 0
        %937 = vmatprep.mubr.bf16.mxu0 0
        %938 = vmatmul.mubr.bf16.gmra.mrb[0].mxu0 %v587
        %v939 = vpop.f32.mrb[0].mxu0
        %v940 = vadd.f32 0.0, %v939
        %v941 = vpop.f32.mrb[0].mxu0
        %v942 = vpop.f32.mrb[0].mxu0
        %v943 = vadd.f32 0.0, %v942
        %v944 = vpop.f32.mrb[0].mxu0
        %945 = vmatprep.mubr.bf16.mxu0 0
        %946 = vmatmul.mubr.bf16.gmra.mrb[0].mxu0 %v590
        %v947 = vpop.f32.mrb[0].mxu0
        %v948 = vadd.f32 0.0, %v947
        %v949 = vpop.f32.mrb[0].mxu0
        %v950 = vpop.f32.mrb[0].mxu0
        %v951 = vadd.f32 0.0, %v950
        %v952 = vpop.f32.mrb[0].mxu0
        %953 = vdwg.mxu0
        %v954 = vxor.u32 %v940, 2147483648
        %v955 = vxor.u32 %v943, 2147483648
        %v956 = vxor.u32 %v948, 2147483648
        %v957 = vxor.u32 %v951, 2147483648
        %v958 = vmul.f32 %v954, 1.442695
        %v959 = vpow.pop %v958
        %v960 = vmul.f32 %v955, 1.442695
        %v961 = vpow.pop %v960
        %v962 = vmul.f32 %v956, 1.442695
        %v963 = vpow.pop %v962
        %v964 = vmul.f32 %v957, 1.442695
        %v965 = vpow.pop %v964
        %v966 = vadd.f32 %v959, 1.0
        %v967 = vadd.f32 %v961, 1.0
        %v968 = vadd.f32 %v963, 1.0
        %v969 = vadd.f32 %v965, 1.0
        %v970 = vrcp.pop %v966
        %v971 = vmul.f32 1.0, %v970
        %v972 = vrcp.pop %v967
        %v973 = vmul.f32 1.0, %v972
        %v974 = vrcp.pop %v968
        %v975 = vmul.f32 1.0, %v974
        %v976 = vrcp.pop %v969
        %v977 = vmul.f32 1.0, %v976
        %979 = vset.pattern.permute.xlu0 0
        %980 = vperm.xlu0 %979, %v971
        %v981 = vpop.permute.xlu0 %980
        %984 = vset.pattern.permute.xlu0 0
        %985 = vperm.xlu0 %984, %v973
        %v986 = vpop.permute.xlu0 %985
        %989 = vset.pattern.permute.xlu0 0
        %990 = vperm.xlu0 %989, %v975
        %v991 = vpop.permute.xlu0 %990
        %994 = vset.pattern.permute.xlu0 0
        %995 = vperm.xlu0 %994, %v977
        %v996 = vpop.permute.xlu0 %995
        %v998 = vmul.f32 %v832, %v981
        %v999 = vmul.f32 %v835, %v986
        %v1000 = vmul.f32 %v840, %v991
        %v1001 = vmul.f32 %v843, %v996
        %v1002 = vunpack.c.l.bf16 %v726
        %v1003 = vunpack.c.l.bf16 %v727
        %v1004 = vunpack.c.l.bf16 %v728
        %v1005 = vunpack.c.l.bf16 %v729
        %v1006 = vadd.f32 %v998, %v1002
        %v1007 = vadd.f32 %v999, %v1003
        %v1008 = vadd.f32 %v1000, %v1004
        %v1009 = vadd.f32 %v1001, %v1005
        %v1010 = vmax.f32 %v1006, 0.0
        %v1011 = vmax.f32 %v1007, 0.0
        %v1012 = vmax.f32 %v1008, 0.0
        %v1013 = vmax.f32 %v1009, 0.0
        %v1014 = vpack.c.bf16 %v1011, %v1010
        %v1015 = vpack.c.bf16 %v1013, %v1012
        %v1018 = vunpack.c.l.b16 %v1014
        %v1019 = vunpack.c.h.b16 %v1014
        %v1020 = vunpack.c.l.b16 %v1015
        %v1021 = vunpack.c.h.b16 %v1015
        %v1022 = vpack.c.b16 %v1018, %v1018
        %v1023 = vpack.c.b16 %v1019, %v1019
        %v1024 = vpack.c.b16 %v1020, %v1020
        %v1025 = vpack.c.b16 %v1021, %v1021
        %s1030 = scalar_lea.vmem %s297, 16 [#allocation5]
        %1031 = vst [vmem:[%s1030] sm:$0xf] %v1022
        %1032 = vst [vmem:[%s1030 + $0x4] sm:$0xf] %v1023
        %1033 = vst [vmem:[%s1030 + $0x8] sm:$0xf] %v1024
        %1034 = vst [vmem:[%s1030 + $0xc] sm:$0xf] %v1025
        %s1035 = sand.u32 %s184, 1
        %s1036 = scalar_lea.sflag [#allocation4], %s1035
        %s1037 = sand.u32 %s184, 1
        %s1038 = smul.addr %s1037, 32
        %s1039 = scalar_lea.vmem [#allocation5], %s1038
        // Predicated region
        $region53: #{tpu_custom_call.1} parent=47 // pred_check
          %p1040 = pneg %p194
        $region54: #{tpu_custom_call.1} parent=47 // pred_check_branch
          %1042 = sbr.rel (%p1040) target = $region56
        $region55: #{tpu_custom_call.1} parent=47 // pred_region
          %s1043 = smul.u32 2, %s24
          %s1045 = ssub.s32 512, 512
          %1046 = vsyncadd %s1036, %s1045
          %s1047 = smul.addr %s1043, 4
          %s1048 = smul.addr %s1047, 64
          %s1049 = scalar_lea.hbm %s7, %s1048
          %s1050 = sshll.u32 %s1039, 4
          %s1051 = int_to_ptr.vmem [resolvable:$true] %s1050
          %1056 = dma.vmem_to_hbm [thread:$0]  %s1051, 512, %s1049, %s1036, 64, 64, 4
        $region56: #{tpu_custom_call.1} parent=47 // pred_fallthru
          _
      $region48: #{tpu_custom_call.1} parent=5 // pred_fallthru
        _
      %p1057 = scmp.le.s32.totalorder 2, %s19
      // Predicated region
      $region57: #{tpu_custom_call.1} parent=5 // pred_check
        %p1058 = pneg %p1057
      $region58: #{tpu_custom_call.1} parent=5 // pred_check_branch
        %1060 = sbr.rel (%p1058) target = $region60
      $region59: #{tpu_custom_call.1} parent=5 // pred_region
        %s1061 = ssub.s32 %s19, 2
        // Predicated region
        $region61: #{tpu_custom_call.1} parent=59 // pred_check
          %p1062 = pneg %p200
        $region62: #{tpu_custom_call.1} parent=59 // pred_check_branch
          %1064 = sbr.rel (%p1062) target = $region64
        $region63: #{tpu_custom_call.1} parent=59 // pred_region
          %s1065 = sand.u32 %s185, 1
          %s1066 = scalar_lea.sflag [#allocation4], %s1065
          %s1067 = sand.u32 %s185, 1
          %s1068 = smul.addr %s1067, 32
          %s1069 = scalar_lea.vmem [#allocation5], %s1068
          %1070 = dma.done %s1066, 512
        $region64: #{tpu_custom_call.1} parent=59 // pred_fallthru
          _
      $region60: #{tpu_custom_call.1} parent=5 // pred_fallthru
        _
    $region6: #{tpu_custom_call.1} parent=1 // loop_footer
      %s23 = sadd.s32 1, %s19
    $region7: #{tpu_custom_call.1} parent=1 // loop_footer_branch
      %18 = sbr.rel target = $region3
    $region8: #{tpu_custom_call.1} parent=1 // loop_exit
      _
    %1071 = vsyncpa [#allocation3], 1
    %s1072 = scalar_lea.sflag [#allocation3], 1
    %1073 = vsyncpa %s1072, 1
    %1074 = vsyncpa [#allocation4], 1
    %s1075 = scalar_lea.sflag [#allocation4], 1
    %1076 = vsyncpa %s1075, 1

</llo_original>
